<compile_context>
chip_gen: v6e
topology: v6e:2x2x1
jax: 0.10.0
libtpu: 0.0.40
codegen_flags: <defaults>
</compile_context>

<pallas_src>
import jax
import jax.numpy as jnp
from jax.experimental import pallas as pl
from jax.experimental.pallas import tpu as pltpu


_LANE = 128


def _round_up(x, m):
    return ((x + m - 1) // m) * m


# ---------------------------------------------------------------------------
# Fused Pallas kernel. For one tile of pixel rows:
#   feat = relu(cols @ W1 + b1)     (backbone 3x3/s2 conv as im2col matmul)
#   out  = feat @ W2 + b2           (1x1 projection conv)
# `feat` lives only in vregs/VMEM inside the kernel -> no HBM round trip.
# Zero-padded Cf / E columns contribute exact zeros and are sliced off (E only
# when padding was actually applied).
# ---------------------------------------------------------------------------
def _hybrid_embed_kernel(cols_ref, w1_ref, b1_ref, w2_ref, b2_ref, o_ref):
    feat = jnp.dot(cols_ref[...], w1_ref[...],
                   preferred_element_type=jnp.float32)
    feat = jnp.maximum(feat + b1_ref[...], 0.0)
    out = jnp.dot(feat.astype(jnp.bfloat16), w2_ref[...],
                  preferred_element_type=jnp.float32)
    o_ref[...] = (out + b2_ref[...]).astype(o_ref.dtype)


def fused_embed_matmul(cols, w1, b1, w2, b2, *, tm=None,
                       out_dtype=jnp.bfloat16):
    """cols: (M, K1); w1: (K1, Cf); b1: (Cf,); w2: (Cf, E); b2: (E,).

    Returns (M, E) in `out_dtype`.  Matmul operands run in bf16 on the MXU with
    f32 accumulation.  cols keeps its true K1 and true M (ragged last block);
    only the small weight/bias operands are lane-padded to 128.
    """
    M, K1 = cols.shape
    Cf = w1.shape[1]
    E = w2.shape[1]

    Cfp = _round_up(Cf, _LANE)
    Ep = _round_up(E, _LANE)

    if tm is None:
        # Multiple of 16 (bf16 sublane minimum), capped at 512, and sized so
        # there are >= ~8 grid steps total (several per v7x TensorCore) so the
        # DMA pipeline reaches steady state.
        tm = max(16, min(512, _round_up(pl.cdiv(M, 8), 16)))

    cols = cols.astype(jnp.bfloat16)            # no K1 / M padding
    w1_p = w1.astype(jnp.bfloat16)
    w2_p = w2.astype(jnp.bfloat16)
    b1_p = b1.astype(jnp.float32).reshape(1, Cf)
    b2_p = b2.astype(jnp.float32).reshape(1, E)
    if Cfp != Cf:
        w1_p = jnp.pad(w1_p, ((0, 0), (0, Cfp - Cf)))
        w2_p = jnp.pad(w2_p, ((0, Cfp - Cf), (0, 0)))
        b1_p = jnp.pad(b1_p, ((0, 0), (0, Cfp - Cf)))
    if Ep != E:
        w2_p = jnp.pad(w2_p, ((0, 0), (0, Ep - E)))
        b2_p = jnp.pad(b2_p, ((0, 0), (0, Ep - E)))

    grid = (pl.cdiv(M, tm),)

    out_itemsize = jnp.dtype(out_dtype).itemsize
    flops = 2 * M * K1 * Cfp + 2 * M * Cfp * Ep
    bytes_accessed = (cols.size * 2 + w1_p.size * 2 + w2_p.size * 2
                      + b1_p.size * 4 + b2_p.size * 4 + M * Ep * out_itemsize)

    # Grid-invariant operands: single resident buffer (no dead double buffer).
    resident = pl.Buffered(1)

    out = pl.pallas_call(
        _hybrid_embed_kernel,
        out_shape=jax.ShapeDtypeStruct((M, Ep), out_dtype),
        grid_spec=pltpu.PrefetchScalarGridSpec(
            num_scalar_prefetch=0,
            grid=grid,
            in_specs=[
                # pixel-row tile; last dim == full array dim (true K1)
                pl.BlockSpec((tm, K1), lambda i: (i, 0)),
                # backbone weight / bias (resident across all grid steps)
                pl.BlockSpec((K1, Cfp), lambda i: (0, 0),
                             pipeline_mode=resident),
                pl.BlockSpec((1, Cfp), lambda i: (0, 0),
                             pipeline_mode=resident),
                # projection weight / bias (resident across all grid steps)
                pl.BlockSpec((Cfp, Ep), lambda i: (0, 0),
                             pipeline_mode=resident),
                pl.BlockSpec((1, Ep), lambda i: (0, 0),
                             pipeline_mode=resident),
            ],
            out_specs=pl.BlockSpec((tm, Ep), lambda i: (i, 0)),
        ),
        compiler_params=pltpu.CompilerParams(
            dimension_semantics=("parallel",),
            # Comfortably fits tm=512 / Cf=2048 / E=768 bf16 buffers and stays
            # within v7x's 64 MiB physical VMEM; v5e/v6e have more headroom.
            vmem_limit_bytes=32 * 1024 * 1024),
        cost_estimate=pl.CostEstimate(
            flops=flops, transcendentals=0, bytes_accessed=bytes_accessed),
    )(cols, w1_p, b1_p, w2_p, b2_p)

    if Ep != E:               # only copy when lane padding was actually applied
        out = out[:, :E]
    return out


# ---------------------------------------------------------------------------
# im2col glue (plain JAX) for the 3x3 / stride-2 / pad-1 backbone conv.
# Built channel-minor in NHWC (concat of 9 shifted slices) so no transpose of
# the 9x-expanded patch tensor is needed.  Column index = (i*kw + j)*Cin + c;
# the (9*Cin, Cf) weight is permuted at trace time to match.
# ---------------------------------------------------------------------------
def im2col_nhwc(x_nchw, kh, kw, stride, pad):
    x = jnp.transpose(x_nchw, (0, 2, 3, 1))          # NCHW -> NHWC (tiny Cin)
    x = jnp.pad(x, ((0, 0), (pad, pad), (pad, pad), (0, 0)))
    B, Hp, Wp, C = x.shape
    Ho = (Hp - kh) // stride + 1
    Wo = (Wp - kw) // stride + 1
    slices = [x[:, i:i + stride * Ho:stride, j:j + stride * Wo:stride, :]
              for i in range(kh) for j in range(kw)]
    cols = jnp.concatenate(slices, axis=-1)          # (B, Ho, Wo, kh*kw*C)
    return cols.reshape(B * Ho * Wo, kh * kw * C), Ho, Wo


# ---------------------------------------------------------------------------
# HybridEmbed forward
# ---------------------------------------------------------------------------
def hybrid_embed_forward(x, params):
    """x: (B, in_chans, H, W) NCHW -> (B, num_patches, embed_dim)."""
    B = x.shape[0]

    bw, bb = params["backbone_w"], params["backbone_b"]   # (Cf, Cin, 3, 3), (Cf,)
    pw, pb = params["proj_w"], params["proj_b"]            # (E, Cf, 1, 1), (E,)
    Cf, Cin, kh, kw = bw.shape

    # im2col in bf16: halves HBM traffic of the 9x-expanded patch matrix.
    cols, Ho, Wo = im2col_nhwc(x.astype(jnp.bfloat16), kh, kw, stride=2, pad=1)

    # Weight row order matches the NHWC channel-minor column order:
    # row index = (i*kw + j)*Cin + c.
    w1 = bw.transpose(2, 3, 1, 0).reshape(kh * kw * Cin, Cf)   # (Cin*9, Cf)
    w2 = pw.reshape(pw.shape[0], pw.shape[1]).T                # (Cf, E)

    # Single fused kernel: backbone conv + ReLU + 1x1 projection.
    out = fused_embed_matmul(cols, w1, bb, w2, pb)             # (B*Ho*Wo, E)

    # flatten(2).transpose(1,2) equivalent: (B, Ho*Wo, E)
    return out.reshape(B, Ho * Wo, out.shape[-1])


# ---------------------------------------------------------------------------
# Plain-JAX f32 reference for correctness check
# ---------------------------------------------------------------------------
def reference_forward(x, params):
    bw, bb = params["backbone_w"], params["backbone_b"]
    pw, pb = params["proj_w"], params["proj_b"]
    feat = jax.lax.conv_general_dilated(
        x, bw, window_strides=(2, 2), padding=((1, 1), (1, 1)),
        dimension_numbers=("NCHW", "OIHW", "NCHW"))
    feat = jnp.maximum(feat + bb[None, :, None, None], 0.0)
    proj = jax.lax.conv_general_dilated(
        feat, pw, window_strides=(1, 1), padding="VALID",
        dimension_numbers=("NCHW", "OIHW", "NCHW"))
    proj = proj + pb[None, :, None, None]
    B, E, H, W = proj.shape
    return proj.reshape(B, E, H * W).transpose(0, 2, 1)


if __name__ == "__main__":
    # Small shapes consistent with the module's forward
    B, Cin, H, W = 2, 4, 16, 16
    feature_dim, embed_dim = 32, 64

    key = jax.random.PRNGKey(0)
    kx, k1, k2, k3, k4 = jax.random.split(key, 5)

    x = jax.random.normal(kx, (B, Cin, H, W), dtype=jnp.float32)
    params = {
        "backbone_w": 0.1 * jax.random.normal(
            k1, (feature_dim, Cin, 3, 3), dtype=jnp.float32),
        "backbone_b": 0.05 * jax.random.normal(
            k2, (feature_dim,), dtype=jnp.float32),
        "proj_w": 0.1 * jax.random.normal(
            k3, (embed_dim, feature_dim, 1, 1), dtype=jnp.float32),
        "proj_b": 0.05 * jax.random.normal(
            k4, (embed_dim,), dtype=jnp.float32),
    }

    out = jax.block_until_ready(hybrid_embed_forward(x, params))
    ref = jax.block_until_ready(reference_forward(x, params))

    assert out.shape == (B, (H // 2) * (W // 2), embed_dim), out.shape
    # bf16 operands + bf16 output with f32 accumulation -> loosened tolerance.
    assert jnp.allclose(out.astype(jnp.float32), ref, atol=2e-2, rtol=2e-2), \
        "mismatch vs reference"
    print("KERNEL_OK")
</pallas_src>

<mosaic_0001>
module attributes {stable_mosaic.version = 11 : i64} {
  func.func @_hybrid_embed_kernel(%arg0: i32, %arg1: memref<16x36xbf16, #tpu.memory_space<vmem>>, %arg2: memref<36x128xbf16, #tpu.memory_space<vmem>>, %arg3: memref<1x128xf32, #tpu.memory_space<vmem>>, %arg4: memref<128x128xbf16, #tpu.memory_space<vmem>>, %arg5: memref<1x128xf32, #tpu.memory_space<vmem>>, %arg6: memref<16x128xbf16, #tpu.memory_space<vmem>>) attributes {dimension_semantics = [#tpu.dimension_semantics<parallel>], iteration_bounds = array<i64: 8>, scalar_prefetch = 0 : i64, scratch_operands = 0 : i64, tpu.core_type = #tpu.core_type<tc>, window_params = [{transform_indices = @transform_0, window_bounds = array<i64: 16, 36>}, {pipeline_mode = #tpu.pipeline_mode<synchronous>, transform_indices = @transform_1, window_bounds = array<i64: 36, 128>}, {pipeline_mode = #tpu.pipeline_mode<synchronous>, transform_indices = @transform_2, window_bounds = array<i64: 1, 128>}, {pipeline_mode = #tpu.pipeline_mode<synchronous>, transform_indices = @transform_3, window_bounds = array<i64: 128, 128>}, {pipeline_mode = #tpu.pipeline_mode<synchronous>, transform_indices = @transform_4, window_bounds = array<i64: 1, 128>}, {transform_indices = @transform_5, window_bounds = array<i64: 16, 128>}]} {
    %c0 = arith.constant 0 : index
    %c0_0 = arith.constant 0 : index
    %0 = vector.load %arg1[%c0, %c0_0] : memref<16x36xbf16, #tpu.memory_space<vmem>>, vector<16x36xbf16>
    %c0_1 = arith.constant 0 : index
    %c0_2 = arith.constant 0 : index
    %1 = vector.load %arg2[%c0_1, %c0_2] : memref<36x128xbf16, #tpu.memory_space<vmem>>, vector<36x128xbf16>
    %cst = arith.constant dense<0.000000e+00> : vector<16x128xf32>
    %2 = tpu.matmul %0, %1, %cst {dimension_numbers = #tpu.dot_dimension_numbers<[1], [0], [0], [1], [0, 0, 1, 1], [], []>} : vector<16x36xbf16>, vector<36x128xbf16>, vector<16x128xf32> -> vector<16x128xf32>
    %c0_3 = arith.constant 0 : index
    %c0_4 = arith.constant 0 : index
    %3 = vector.load %arg3[%c0_3, %c0_4] : memref<1x128xf32, #tpu.memory_space<vmem>>, vector<1x128xf32>
    %4 = vector.broadcast %3 : vector<1x128xf32> to vector<16x128xf32>
    %5 = arith.addf %2, %4 : vector<16x128xf32>
    %cst_5 = arith.constant 0.000000e+00 : f32
    %6 = vector.broadcast %cst_5 : f32 to vector<16x128xf32>
    %7 = arith.maximumf %5, %6 : vector<16x128xf32>
    %8 = arith.truncf %7 : vector<16x128xf32> to vector<16x128xbf16>
    %c0_6 = arith.constant 0 : index
    %c0_7 = arith.constant 0 : index
    %9 = vector.load %arg4[%c0_6, %c0_7] : memref<128x128xbf16, #tpu.memory_space<vmem>>, vector<128x128xbf16>
    %cst_8 = arith.constant dense<0.000000e+00> : vector<16x128xf32>
    %10 = tpu.matmul %8, %9, %cst_8 {dimension_numbers = #tpu.dot_dimension_numbers<[1], [0], [0], [1], [0, 0, 1, 1], [], []>} : vector<16x128xbf16>, vector<128x128xbf16>, vector<16x128xf32> -> vector<16x128xf32>
    %c0_9 = arith.constant 0 : index
    %c0_10 = arith.constant 0 : index
    %11 = vector.load %arg5[%c0_9, %c0_10] : memref<1x128xf32, #tpu.memory_space<vmem>>, vector<1x128xf32>
    %12 = vector.broadcast %11 : vector<1x128xf32> to vector<16x128xf32>
    %13 = arith.addf %10, %12 : vector<16x128xf32>
    %14 = arith.truncf %13 : vector<16x128xf32> to vector<16x128xbf16>
    %c0_11 = arith.constant 0 : index
    %c0_12 = arith.constant 0 : index
    %15 = vector.load %arg6[%c0_11, %c0_12] : memref<16x128xbf16, #tpu.memory_space<vmem>>, vector<16x128xbf16>
    tpu.vector_store %arg6[%c0_11, %c0_12], %14 {strides = array<i32>} : memref<16x128xbf16, #tpu.memory_space<vmem>>, vector<16x128xbf16>,
    return
  }
  func.func @transform_0(%arg0: i32) -> (i32, i32) {
    %c0_i32 = arith.constant 0 : i32
    %c0_i32_0 = arith.constant 0 : i32
    return %arg0, %c0_i32 : i32, i32
  }
  func.func @transform_1(%arg0: i32) -> (i32, i32) {
    %c0_i32 = arith.constant 0 : i32
    %c0_i32_0 = arith.constant 0 : i32
    %c0_i32_1 = arith.constant 0 : i32
    return %c0_i32, %c0_i32_0 : i32, i32
  }
  func.func @transform_2(%arg0: i32) -> (i32, i32) {
    %c0_i32 = arith.constant 0 : i32
    %c0_i32_0 = arith.constant 0 : i32
    %c0_i32_1 = arith.constant 0 : i32
    return %c0_i32, %c0_i32_0 : i32, i32
  }
  func.func @transform_3(%arg0: i32) -> (i32, i32) {
    %c0_i32 = arith.constant 0 : i32
    %c0_i32_0 = arith.constant 0 : i32
    %c0_i32_1 = arith.constant 0 : i32
    return %c0_i32, %c0_i32_0 : i32, i32
  }
  func.func @transform_4(%arg0: i32) -> (i32, i32) {
    %c0_i32 = arith.constant 0 : i32
    %c0_i32_0 = arith.constant 0 : i32
    %c0_i32_1 = arith.constant 0 : i32
    return %c0_i32, %c0_i32_0 : i32, i32
  }
  func.func @transform_5(%arg0: i32) -> (i32, i32) {
    %c0_i32 = arith.constant 0 : i32
    %c0_i32_0 = arith.constant 0 : i32
    return %arg0, %c0_i32 : i32, i32
  }
}

</mosaic_0001>

<llo_original>
// kernel: tpu_custom_call.1
$region0: #{tpu_custom_call.1}
  #allocation0 [shape = 'u32[]', space=smem, size = 0x4, offset = 0x4, fixed_abs, tag = 'smem constant byte address 0x4 - core index']
  #allocation1 [shape = 'u32[144,128]{1,0:T(1,128)}', space=vmem, size = 0x12000, scoped, tag = 'internal scratch']
  %s0 = inlined_call_operand.vmem [shape: bf16[128,36], index: 0, kind: input, shape index: {}]
  %s1 = inlined_call_operand.vmem [shape: bf16[36,128], index: 1, kind: input, shape index: {}]
  %s2 = inlined_call_operand.vmem [shape: f32[1,128], index: 2, kind: input, shape index: {}]
  %s3 = inlined_call_operand.vmem [shape: bf16[128,128], index: 3, kind: input, shape index: {}]
  %s4 = inlined_call_operand.vmem [shape: f32[1,128], index: 4, kind: input, shape index: {}]
  %s5 = inlined_call_operand.hbm [shape: bf16[128,128], index: 5, kind: output, shape index: {}]
  %s6 = sld [smem:[#allocation0]]
  $region53: #{tpu_custom_call.1} parent=0
    _
  %s8 = ssub.s32 1, %s6
  %s9 = scalar_select 0, %s8, %s6
  $region1: #{tpu_custom_call.1} parent=0
    #allocation2 [shape = 'u8[8192]{0}', space=vmem, size = 0x2000, scoped, tag = 'output window, operand 0']
    #allocation3 [shape = 's32[2]{0}', space=sflag, size = 0x8, scoped, tag = 'scoped memory for tpu_custom_call.1']
    %10 = vsyncpa [#allocation3], 0
    %s11 = scalar_lea.sflag [#allocation3], 1
    %12 = vsyncpa %s11, 0
    loop: start=0, step=1, limit=10
    $region2: #{tpu_custom_call.1} parent=1 // loop_pre_header
      _
    $region3: #{tpu_custom_call.1} parent=1 // loop_header
      %s14 = sphi 0, %s18
      %p15 = scmp.ge.s32.totalorder %s14, 10
      %s24 = sphi 0, %s26
      %s27 = sphi 0, %s24
      %s28 = sphi 0, %s27
      %s44 = sphi 0, %s28
      %s48 = sphi 0, %s48
      %s50 = sphi 0, %s48
      %s51 = sphi 0, %s50
      %s65 = sphi 0, %s51
      %s69 = sphi 0, %s69
      %s71 = sphi 0, %s69
      %s72 = sphi 0, %s71
      %s86 = sphi 0, %s72
      %s90 = sphi 0, %s90
      %s92 = sphi 0, %s90
      %s93 = sphi 0, %s92
      %s107 = sphi 0, %s93
      %s111 = sphi 0, %s111
      %s113 = sphi 0, %s111
      %s114 = sphi 0, %s113
      %s128 = sphi 0, %s114
      %s134 = sphi 0, %s136
      %s137 = sphi 0, %s134
      %s138 = sphi 0, %s137
      %s154 = sphi 0, %s138
    $region4: #{tpu_custom_call.1} parent=1 // loop_header_branch
      %17 = sbr.rel (%p15) target = $region8
    $region5: #{tpu_custom_call.1} parent=1 // loop_body
      %s19 = ssub.s32 %s14, 1
      %s20 = ssub.s32 %s14, 2
      %s21 = sadd.s32 %s14, 1
      %s22 = ssub.s32 %s14, %s21
      %p23 = scmp.eq.s32.totalorder %s22, 0
      %s25 = sadd.s32 %s24, 1
      %s26 = scalar_select %p23, %s24, %s25
      %p29 = pneg %p23
      %p30 = scmp.eq.s32.totalorder %s14, 7
      %p31 = por %p29, %p30
      %p32 = scmp.ne.s32.totalorder %s24, %s27
      %p33 = scmp.eq.s32.totalorder %s14, 0
      %p34 = por %p32, %p33
      %p35 = scmp.ne.s32.totalorder %s24, %s27
      %p36 = scmp.eq.s32.totalorder %s19, 7
      %p37 = por %p35, %p36
      %p38 = scmp.ne.s32.totalorder %s27, %s28
      %p39 = scmp.eq.s32.totalorder %s19, 0
      %p40 = por %p38, %p39
      %p41 = scmp.ne.s32.totalorder %s27, %s28
      %p42 = scmp.eq.s32.totalorder %s20, 7
      %p43 = por %p41, %p42
      %p45 = scmp.ne.s32.totalorder %s28, %s44
      %p46 = scmp.eq.s32.totalorder %s20, 0
      %p47 = por %p45, %p46
      %s49 = sadd.s32 %s48, 1
      %p52 = scmp.eq.s32.totalorder %s14, 7
      %p53 = scmp.ne.s32.totalorder %s48, %s50
      %p54 = scmp.eq.s32.totalorder %s14, 0
      %p55 = por %p53, %p54
      %p56 = scmp.ne.s32.totalorder %s48, %s50
      %p57 = scmp.eq.s32.totalorder %s19, 7
      %p58 = por %p56, %p57
      %p59 = scmp.ne.s32.totalorder %s50, %s51
      %p60 = scmp.eq.s32.totalorder %s19, 0
      %p61 = por %p59, %p60
      %p62 = scmp.ne.s32.totalorder %s50, %s51
      %p63 = scmp.eq.s32.totalorder %s20, 7
      %p64 = por %p62, %p63
      %p66 = scmp.ne.s32.totalorder %s51, %s65
      %p67 = scmp.eq.s32.totalorder %s20, 0
      %p68 = por %p66, %p67
      %s70 = sadd.s32 %s69, 1
      %p73 = scmp.eq.s32.totalorder %s14, 7
      %p74 = scmp.ne.s32.totalorder %s69, %s71
      %p75 = scmp.eq.s32.totalorder %s14, 0
      %p76 = por %p74, %p75
      %p77 = scmp.ne.s32.totalorder %s69, %s71
      %p78 = scmp.eq.s32.totalorder %s19, 7
      %p79 = por %p77, %p78
      %p80 = scmp.ne.s32.totalorder %s71, %s72
      %p81 = scmp.eq.s32.totalorder %s19, 0
      %p82 = por %p80, %p81
      %p83 = scmp.ne.s32.totalorder %s71, %s72
      %p84 = scmp.eq.s32.totalorder %s20, 7
      %p85 = por %p83, %p84
      %p87 = scmp.ne.s32.totalorder %s72, %s86
      %p88 = scmp.eq.s32.totalorder %s20, 0
      %p89 = por %p87, %p88
      %s91 = sadd.s32 %s90, 1
      %p94 = scmp.eq.s32.totalorder %s14, 7
      %p95 = scmp.ne.s32.totalorder %s90, %s92
      %p96 = scmp.eq.s32.totalorder %s14, 0
      %p97 = por %p95, %p96
      %p98 = scmp.ne.s32.totalorder %s90, %s92
      %p99 = scmp.eq.s32.totalorder %s19, 7
      %p100 = por %p98, %p99
      %p101 = scmp.ne.s32.totalorder %s92, %s93
      %p102 = scmp.eq.s32.totalorder %s19, 0
      %p103 = por %p101, %p102
      %p104 = scmp.ne.s32.totalorder %s92, %s93
      %p105 = scmp.eq.s32.totalorder %s20, 7
      %p106 = por %p104, %p105
      %p108 = scmp.ne.s32.totalorder %s93, %s107
      %p109 = scmp.eq.s32.totalorder %s20, 0
      %p110 = por %p108, %p109
      %s112 = sadd.s32 %s111, 1
      %p115 = scmp.eq.s32.totalorder %s14, 7
      %p116 = scmp.ne.s32.totalorder %s111, %s113
      %p117 = scmp.eq.s32.totalorder %s14, 0
      %p118 = por %p116, %p117
      %p119 = scmp.ne.s32.totalorder %s111, %s113
      %p120 = scmp.eq.s32.totalorder %s19, 7
      %p121 = por %p119, %p120
      %p122 = scmp.ne.s32.totalorder %s113, %s114
      %p123 = scmp.eq.s32.totalorder %s19, 0
      %p124 = por %p122, %p123
      %p125 = scmp.ne.s32.totalorder %s113, %s114
      %p126 = scmp.eq.s32.totalorder %s20, 7
      %p127 = por %p125, %p126
      %p129 = scmp.ne.s32.totalorder %s114, %s128
      %p130 = scmp.eq.s32.totalorder %s20, 0
      %p131 = por %p129, %p130
      %s132 = ssub.s32 %s14, %s21
      %p133 = scmp.eq.s32.totalorder %s132, 0
      %s135 = sadd.s32 %s134, 1
      %s136 = scalar_select %p133, %s134, %s135
      %p139 = pneg %p133
      %p140 = scmp.eq.s32.totalorder %s14, 7
      %p141 = por %p139, %p140
      %p142 = scmp.ne.s32.totalorder %s134, %s137
      %p143 = scmp.eq.s32.totalorder %s14, 0
      %p144 = por %p142, %p143
      %p145 = scmp.ne.s32.totalorder %s134, %s137
      %p146 = scmp.eq.s32.totalorder %s19, 7
      %p147 = por %p145, %p146
      %p148 = scmp.ne.s32.totalorder %s137, %s138
      %p149 = scmp.eq.s32.totalorder %s19, 0
      %p150 = por %p148, %p149
      %p151 = scmp.ne.s32.totalorder %s137, %s138
      %p152 = scmp.eq.s32.totalorder %s20, 7
      %p153 = por %p151, %p152
      %p155 = scmp.ne.s32.totalorder %s138, %s154
      %p156 = scmp.eq.s32.totalorder %s20, 0
      %p157 = por %p155, %p156
      %p158 = scmp.le.s32.totalorder 1, %s14
      %p159 = scmp.lt.s32.totalorder %s14, 9
      %p160 = pnand %p158, %p159
      %p161 = pneg %p160
      // Predicated region
      $region9: #{tpu_custom_call.1} parent=5 // pred_check
        _
      $region10: #{tpu_custom_call.1} parent=5 // pred_check_branch
        %163 = sbr.rel (%p160) target = $region12
      $region11: #{tpu_custom_call.1} parent=5 // pred_region
        %s164 = ssub.s32 %s14, 1
        // Predicated region
        $region13: #{tpu_custom_call.1} parent=11 // pred_check
          %p165 = pneg %p61
        $region14: #{tpu_custom_call.1} parent=11 // pred_check_branch
          %167 = sbr.rel (%p165) target = $region16
        $region15: #{tpu_custom_call.1} parent=11 // pred_region
          _
        $region16: #{tpu_custom_call.1} parent=11 // pred_fallthru
          _
        // Predicated region
        $region17: #{tpu_custom_call.1} parent=11 // pred_check
          %p168 = pneg %p82
        $region18: #{tpu_custom_call.1} parent=11 // pred_check_branch
          %170 = sbr.rel (%p168) target = $region20
        $region19: #{tpu_custom_call.1} parent=11 // pred_region
          _
        $region20: #{tpu_custom_call.1} parent=11 // pred_fallthru
          _
        // Predicated region
        $region21: #{tpu_custom_call.1} parent=11 // pred_check
          %p171 = pneg %p103
        $region22: #{tpu_custom_call.1} parent=11 // pred_check_branch
          %173 = sbr.rel (%p171) target = $region24
        $region23: #{tpu_custom_call.1} parent=11 // pred_region
          _
        $region24: #{tpu_custom_call.1} parent=11 // pred_fallthru
          _
        // Predicated region
        $region25: #{tpu_custom_call.1} parent=11 // pred_check
          %p174 = pneg %p124
        $region26: #{tpu_custom_call.1} parent=11 // pred_check_branch
          %176 = sbr.rel (%p174) target = $region28
        $region27: #{tpu_custom_call.1} parent=11 // pred_region
          _
        $region28: #{tpu_custom_call.1} parent=11 // pred_fallthru
          _
      $region12: #{tpu_custom_call.1} parent=5 // pred_fallthru
        _
      %p177 = scmp.lt.s32.totalorder %s14, 8
      // Predicated region
      $region29: #{tpu_custom_call.1} parent=5 // pred_check
        %p178 = pneg %p177
      $region30: #{tpu_custom_call.1} parent=5 // pred_check_branch
        %180 = sbr.rel (%p178) target = $region32
      $region31: #{tpu_custom_call.1} parent=5 // pred_region
        // Predicated region
        $region33: #{tpu_custom_call.1} parent=31 // pred_check
          %p181 = pneg %p34
        $region34: #{tpu_custom_call.1} parent=31 // pred_check_branch
          %183 = sbr.rel (%p181) target = $region36
        $region35: #{tpu_custom_call.1} parent=31 // pred_region
          %s184 = smul.u32 2, %s14
          %p185 = scmp.lt.s32.totalorder %s184, 15
          %s186 = scalar_select %p185, %s184, 15
          %s187 = smul.addr %s186, 4
          %s188 = scalar_lea.vmem %s0, %s187
          %s189 = smul.u32 2, %s14
        $region36: #{tpu_custom_call.1} parent=31 // pred_fallthru
          _
      $region32: #{tpu_custom_call.1} parent=5 // pred_fallthru
        _
      %p190 = scmp.le.s32.totalorder 1, %s14
      %p191 = scmp.lt.s32.totalorder %s14, 9
      %p192 = pnand %p190, %p191
      %p193 = pneg %p192
      // Predicated region
      $region37: #{tpu_custom_call.1} parent=5 // pred_check
        _
      $region38: #{tpu_custom_call.1} parent=5 // pred_check_branch
        %195 = sbr.rel (%p192) target = $region40
      $region39: #{tpu_custom_call.1} parent=5 // pred_region
        %s196 = ssub.s32 %s14, 1
        %s197 = smul.u32 2, %s19
        %p198 = scmp.lt.s32.totalorder %s197, 15
        %s199 = scalar_select %p198, %s197, 15
        %s200 = smul.addr %s199, 4
        %s201 = scalar_lea.vmem %s0, %s200
        %p202 = pneg %p40
        %p203 = pneg %p37
        %p204 = pneg %p61
        %p205 = pneg %p58
        %p206 = pneg %p82
        %p207 = pneg %p79
        %p208 = pneg %p103
        %p209 = pneg %p100
        %p210 = pneg %p124
        %p211 = pneg %p121
        %p212 = pneg %p150
        %p213 = pneg %p147
        %s214 = sand.u32 %s137, 1
        %s215 = scalar_lea.sflag [#allocation3], %s214
        %s216 = sand.u32 %s137, 1
        %s217 = smul.addr %s216, 8
        %s218 = scalar_lea.vmem [#allocation2], %s217
        %s219 = smul.u32 2, %s19
        %p220 = scmp.lt.s32.totalorder %s219, 15
        %s221 = scalar_select %p220, %s219, 15
        %s222 = smul.addr %s221, 4
        %s223 = scalar_lea.vmem %s0, %s222
        %s224 = smul.u32 2, %s19
        %s225 = smul.u32 2, %s19
        %v227 = vld [vmem:[%s223] sm:$0xf]
        %v228 = vld [vmem:[%s223 + $0x4] sm:$0xf]
        %v229 = vld [vmem:[%s1] sm:$0xf]
        %v230 = vld [vmem:[%s1 + $0x4] sm:$0xf]
        %v231 = vld [vmem:[%s1 + $0x8] sm:$0xf]
        %v232 = vld [vmem:[%s1 + $0xc] sm:$0xf]
        %v233 = vld [vmem:[%s1 + $0x10] sm:$0x3]
        %v234 = vld [vmem:[%s2] sm:$0x1]
        %v236 = vlaneseq
        %v237 = vshrl.u32 %v236, 7
        %v238 = vsub.s32 0, %v237
        %v239 = vrot.slane %v234, %v238
        %v243 = vunpack.c.l.b16 %v227
        %v244 = vunpack.c.l.b16 %v228
        %v245 = vpack.c.b16 %v244, %v243
        %v251 = vunpack.c.l.b16 %v229
        %v252 = vunpack.c.l.b16 %v230
        %v253 = vunpack.c.l.b16 %v231
        %v254 = vunpack.c.l.b16 %v232
        %v255 = vunpack.c.l.b16 %v233
        %v256 = vpack.c.b16 %v252, %v251
        %v257 = vpack.c.b16 %v254, %v253
        %v258 = vpack.c.b16 %v255, %v255
        %vm261 = vcmask 293888
        %v263 = vsel %vm261, %v245, 0
        %vm265 = vcmask 1041408
        %v267 = vsel %vm265, %v258, 0
        %269 = vmatprep.subr.bf16.mxu0 0
        %270 = vmatpush1.bf16.msra.mxu0 0
        %271 = vmatprep.subr.bf16.mxu0 0
        %272 = vmatpush1.bf16.msra.mxu0 0
        %273 = vmatprep.subr.bf16.mxu0 0
        %274 = vmatpush1.bf16.msra.mxu0 0
        %275 = vmatprep.subr.bf16.mxu0 0
        %276 = vmatpush1.bf16.msra.mxu0 0
        %277 = vmatprep.subr.bf16.mxu0 0
        %278 = vmatpush1.bf16.msra.mxu0 0
        %279 = vmatprep.subr.bf16.mxu0 0
        %280 = vmatpush1.bf16.msra.mxu0 %v267
        %281 = vmatprep.subr.bf16.mxu0 0
        %282 = vmatpush1.bf16.msra.mxu0 %v257
        %283 = vmatprep.subr.bf16.mxu0 0
        %284 = vmatpush1.bf16.msra.mxu0 %v256
        %285 = vmatprep.subr.bf16.mxu0 0
        %286 = vmatpush2.bf16.msra.mxu0 0
        %287 = vmatprep.subr.bf16.mxu0 0
        %288 = vmatpush2.bf16.msra.mxu0 0
        %289 = vmatprep.subr.bf16.mxu0 0
        %290 = vmatpush2.bf16.msra.mxu0 0
        %291 = vmatprep.subr.bf16.mxu0 0
        %292 = vmatpush2.bf16.msra.mxu0 0
        %293 = vmatprep.subr.bf16.mxu0 0
        %294 = vmatpush2.bf16.msra.mxu0 0
        %295 = vmatprep.subr.bf16.mxu0 0
        %296 = vmatpush2.bf16.msra.mxu0 0
        %297 = vmatprep.subr.bf16.mxu0 0
        %298 = vmatpush2.bf16.msra.mxu0 0
        %299 = vmatprep.subr.bf16.mxu0 0
        %300 = vmatpush2.bf16.msra.mxu0 0
        %301 = vmatprep.mubr.bf16.mxu0 0
        %302 = vmatmul.mubr.bf16.gmra.mxu0 %v263
        %v303 = vpop.f32.mrf.mxu0
        %v304 = vadd.f32 %v239, %v303
        %v305 = vpop.f32.mrf.mxu0
        %v306 = vpop.f32.mrf.mxu0
        %v307 = vadd.f32 %v239, %v306
        %v308 = vpop.f32.mrf.mxu0
        %309 = vdwg.mxu0
        %v310 = vmax.f32 %v304, 0.0
        %v311 = vmax.f32 %v307, 0.0
        %v312 = vpack.c.bf16 %v311, %v310
        %v313 = vld [vmem:[%s3] sm:$0xf]
        %v314 = vld [vmem:[%s3 + $0x4] sm:$0xf]
        %v315 = vld [vmem:[%s3 + $0x8] sm:$0xf]
        %v316 = vld [vmem:[%s3 + $0xc] sm:$0xf]
        %v317 = vld [vmem:[%s3 + $0x10] sm:$0xf]
        %v318 = vld [vmem:[%s3 + $0x14] sm:$0xf]
        %v319 = vld [vmem:[%s3 + $0x18] sm:$0xf]
        %v320 = vld [vmem:[%s3 + $0x1c] sm:$0xf]
        %v321 = vld [vmem:[%s3 + $0x20] sm:$0xf]
        %v322 = vld [vmem:[%s3 + $0x24] sm:$0xf]
        %v323 = vld [vmem:[%s3 + $0x28] sm:$0xf]
        %v324 = vld [vmem:[%s3 + $0x2c] sm:$0xf]
        %v325 = vld [vmem:[%s3 + $0x30] sm:$0xf]
        %v326 = vld [vmem:[%s3 + $0x34] sm:$0xf]
        %v327 = vld [vmem:[%s3 + $0x38] sm:$0xf]
        %v328 = vld [vmem:[%s3 + $0x3c] sm:$0xf]
        %v329 = vld [vmem:[%s4] sm:$0x1]
        %v331 = vlaneseq
        %v332 = vshrl.u32 %v331, 7
        %v333 = vsub.s32 0, %v332
        %v334 = vrot.slane %v329, %v333
        %v352 = vunpack.c.l.b16 %v313
        %v353 = vunpack.c.l.b16 %v314
        %v354 = vunpack.c.l.b16 %v315
        %v355 = vunpack.c.l.b16 %v316
        %v356 = vunpack.c.l.b16 %v317
        %v357 = vunpack.c.l.b16 %v318
        %v358 = vunpack.c.l.b16 %v319
        %v359 = vunpack.c.l.b16 %v320
        %v360 = vunpack.c.l.b16 %v321
        %v361 = vunpack.c.l.b16 %v322
        %v362 = vunpack.c.l.b16 %v323
        %v363 = vunpack.c.l.b16 %v324
        %v364 = vunpack.c.l.b16 %v325
        %v365 = vunpack.c.l.b16 %v326
        %v366 = vunpack.c.l.b16 %v327
        %v367 = vunpack.c.l.b16 %v328
        %v368 = vpack.c.b16 %v353, %v352
        %v369 = vpack.c.b16 %v355, %v354
        %v370 = vpack.c.b16 %v357, %v356
        %v371 = vpack.c.b16 %v359, %v358
        %v372 = vpack.c.b16 %v361, %v360
        %v373 = vpack.c.b16 %v363, %v362
        %v374 = vpack.c.b16 %v365, %v364
        %v375 = vpack.c.b16 %v367, %v366
        %384 = vmatprep.subr.bf16.mxu0 0
        %385 = vmatpush1.bf16.msra.mxu0 %v375
        %386 = vmatprep.subr.bf16.mxu0 0
        %387 = vmatpush1.bf16.msra.mxu0 %v374
        %388 = vmatprep.subr.bf16.mxu0 0
        %389 = vmatpush1.bf16.msra.mxu0 %v373
        %390 = vmatprep.subr.bf16.mxu0 0
        %391 = vmatpush1.bf16.msra.mxu0 %v372
        %392 = vmatprep.subr.bf16.mxu0 0
        %393 = vmatpush1.bf16.msra.mxu0 %v371
        %394 = vmatprep.subr.bf16.mxu0 0
        %395 = vmatpush1.bf16.msra.mxu0 %v370
        %396 = vmatprep.subr.bf16.mxu0 0
        %397 = vmatpush1.bf16.msra.mxu0 %v369
        %398 = vmatprep.subr.bf16.mxu0 0
        %399 = vmatpush1.bf16.msra.mxu0 %v368
        %400 = vmatprep.subr.bf16.mxu0 0
        %401 = vmatpush2.bf16.msra.mxu0 0
        %402 = vmatprep.subr.bf16.mxu0 0
        %403 = vmatpush2.bf16.msra.mxu0 0
        %404 = vmatprep.subr.bf16.mxu0 0
        %405 = vmatpush2.bf16.msra.mxu0 0
        %406 = vmatprep.subr.bf16.mxu0 0
        %407 = vmatpush2.bf16.msra.mxu0 0
        %408 = vmatprep.subr.bf16.mxu0 0
        %409 = vmatpush2.bf16.msra.mxu0 0
        %410 = vmatprep.subr.bf16.mxu0 0
        %411 = vmatpush2.bf16.msra.mxu0 0
        %412 = vmatprep.subr.bf16.mxu0 0
        %413 = vmatpush2.bf16.msra.mxu0 0
        %414 = vmatprep.subr.bf16.mxu0 0
        %415 = vmatpush2.bf16.msra.mxu0 0
        %416 = vmatprep.mubr.bf16.mxu0 0
        %417 = vmatmul.mubr.bf16.gmra.mxu0 %v312
        %v418 = vpop.f32.mrf.mxu0
        %v419 = vadd.f32 %v334, %v418
        %v420 = vpop.f32.mrf.mxu0
        %v421 = vpop.f32.mrf.mxu0
        %v422 = vadd.f32 %v334, %v421
        %v423 = vpop.f32.mrf.mxu0
        %424 = vdwg.mxu0
        %v425 = vpack.c.bf16 %v422, %v419
        %v427 = vunpack.c.l.b16 %v425
        %v428 = vunpack.c.h.b16 %v425
        %v429 = vpack.c.b16 %v427, %v427
        %v430 = vpack.c.b16 %v428, %v428
        %433 = vst [vmem:[%s218] sm:$0xf] %v429
        %434 = vst [vmem:[%s218 + $0x4] sm:$0xf] %v430
        %s435 = sand.u32 %s137, 1
        %s436 = scalar_lea.sflag [#allocation3], %s435
        %s437 = sand.u32 %s137, 1
        %s438 = smul.addr %s437, 8
        %s439 = scalar_lea.vmem [#allocation2], %s438
        // Predicated region
        $region41: #{tpu_custom_call.1} parent=39 // pred_check
          %p440 = pneg %p147
        $region42: #{tpu_custom_call.1} parent=39 // pred_check_branch
          %442 = sbr.rel (%p440) target = $region44
        $region43: #{tpu_custom_call.1} parent=39 // pred_region
          %s443 = smul.u32 2, %s19
          %s445 = ssub.s32 128, 128
          %446 = vsyncadd %s436, %s445
          %s447 = smul.addr %s443, 64
          %s448 = scalar_lea.hbm %s5, %s447
          %s449 = sshll.u32 %s439, 4
          %s450 = int_to_ptr.vmem [resolvable:$true] %s449
          %455 = dma.vmem_to_hbm [thread:$0]  %s450, 128, %s448, %s436, 64, 64, 4
        $region44: #{tpu_custom_call.1} parent=39 // pred_fallthru
          _
      $region40: #{tpu_custom_call.1} parent=5 // pred_fallthru
        _
      %p456 = scmp.le.s32.totalorder 2, %s14
      // Predicated region
      $region45: #{tpu_custom_call.1} parent=5 // pred_check
        %p457 = pneg %p456
      $region46: #{tpu_custom_call.1} parent=5 // pred_check_branch
        %459 = sbr.rel (%p457) target = $region48
      $region47: #{tpu_custom_call.1} parent=5 // pred_region
        %s460 = ssub.s32 %s14, 2
        // Predicated region
        $region49: #{tpu_custom_call.1} parent=47 // pred_check
          %p461 = pneg %p153
        $region50: #{tpu_custom_call.1} parent=47 // pred_check_branch
          %463 = sbr.rel (%p461) target = $region52
        $region51: #{tpu_custom_call.1} parent=47 // pred_region
          %s464 = sand.u32 %s138, 1
          %s465 = scalar_lea.sflag [#allocation3], %s464
          %s466 = sand.u32 %s138, 1
          %s467 = smul.addr %s466, 8
          %s468 = scalar_lea.vmem [#allocation2], %s467
          %469 = dma.done %s465, 128
        $region52: #{tpu_custom_call.1} parent=47 // pred_fallthru
          _
      $region48: #{tpu_custom_call.1} parent=5 // pred_fallthru
        _
    $region6: #{tpu_custom_call.1} parent=1 // loop_footer
      %s18 = sadd.s32 1, %s14
    $region7: #{tpu_custom_call.1} parent=1 // loop_footer_branch
      %13 = sbr.rel target = $region3
    $region8: #{tpu_custom_call.1} parent=1 // loop_exit
      _
    %470 = vsyncpa [#allocation3], 1
    %s471 = scalar_lea.sflag [#allocation3], 1
    %472 = vsyncpa %s471, 1

</llo_original>
